<compile_context>
chip_gen: v6e
topology: v6e:2x2x1
jax: 0.10.0
libtpu: 0.0.40
codegen_flags: <defaults>
</compile_context>

<pallas_src>
import functools

import jax
import jax.numpy as jnp
from jax.experimental import pallas as pl
from jax.experimental.pallas import tpu as pltpu


# Network feature widths (from the PyTorch module).
D_IN, D_H, D_OUT = 4, 8, 3

# Default batch tile (lane-axis columns per grid step).  Multiple of 128.
DEFAULT_TB = 4096


def _round_up(x: int, m: int) -> int:
    return ((x + m - 1) // m) * m


def mlp_kernel(x_ref, w1_ref, b1_ref, w2_ref, b2_ref, w3_ref, b3_ref,
               w4_ref, b4_ref, o_ref):
    """One batch tile: x_ref is (4, TB), o_ref is (3, TB); weights resident."""
    x = x_ref[...]  # (4, TB) float32 -- batch on lanes.

    h = jnp.dot(w1_ref[...], x, preferred_element_type=jnp.float32) + b1_ref[...]
    h = jnp.maximum(h, 0.0)

    h = jnp.dot(w2_ref[...], h, preferred_element_type=jnp.float32) + b2_ref[...]
    h = jnp.maximum(h, 0.0)

    h = jnp.dot(w3_ref[...], h, preferred_element_type=jnp.float32) + b3_ref[...]
    h = jnp.maximum(h, 0.0)

    logits = jnp.dot(w4_ref[...], h, preferred_element_type=jnp.float32) + b4_ref[...]
    o_ref[...] = logits.astype(o_ref.dtype)


@functools.partial(jax.jit, static_argnames=("tb",))
def neural_network_forward(x, params, tb: int = DEFAULT_TB):
    """x: (B, ...) flattening to (B, 4) float32.  Returns (B, 3) logits."""
    B = x.shape[0]
    x2 = x.reshape(B, -1).astype(jnp.float32)            # Flatten -> (B, 4)
    assert x2.shape[1] == D_IN, f"expected {D_IN} features, got {x2.shape[1]}"

    # Batch on lanes: (4, B), padded up to a multiple of the lane tile.
    tb_eff = min(tb, _round_up(B, 128))                   # lane-aligned tile
    Bp = _round_up(B, tb_eff)
    xt = jnp.pad(x2.T, ((0, 0), (0, Bp - B)))             # (4, Bp)

    w1, b1 = params["w1"], params["b1"]                   # (8,4), (8,1)
    w2, b2 = params["w2"], params["b2"]                   # (8,8), (8,1)
    w3, b3 = params["w3"], params["b3"]                   # (8,8), (8,1)
    w4, b4 = params["w4"], params["b4"]                   # (3,8), (3,1)

    grid = (Bp // tb_eff,)

    # Weights/biases: full-array blocks with constant index maps -> single DMA,
    # VMEM-resident across grid steps.
    def const_spec(a):
        return pl.BlockSpec(a.shape, lambda i: (0, 0))

    in_specs = [
        pl.BlockSpec((D_IN, tb_eff), lambda i: (0, i)),
        const_spec(w1), const_spec(b1),
        const_spec(w2), const_spec(b2),
        const_spec(w3), const_spec(b3),
        const_spec(w4), const_spec(b4),
    ]
    out_specs = pl.BlockSpec((D_OUT, tb_eff), lambda i: (0, i))

    # Advisory cost: ~2*(4*8 + 8*8 + 8*8 + 8*3) = 368 flops/row, ~28 B/row I/O.
    cost = pl.CostEstimate(
        flops=368 * Bp,
        transcendentals=0,
        bytes_accessed=4 * (D_IN + D_OUT) * Bp + 4 * (32 + 64 + 64 + 24 + 27),
    )

    out_t = pl.pallas_call(
        mlp_kernel,
        out_shape=jax.ShapeDtypeStruct((D_OUT, Bp), jnp.float32),
        grid=grid,
        in_specs=in_specs,
        out_specs=out_specs,
        compiler_params=pltpu.CompilerParams(
            dimension_semantics=("parallel",)),    # v7x: shard batch over 2 TCs
        cost_estimate=cost,
    )(xt, w1, b1, w2, b2, w3, b3, w4, b4)

    # Back to PyTorch layout: (B, 3).
    return out_t[:, :B].T


def init_params(key):
    """PyTorch nn.Linear default init (U[-1/sqrt(fan_in), +]), (out,in) weights."""
    dims = [(D_IN, D_H), (D_H, D_H), (D_H, D_H), (D_H, D_OUT)]
    params = {}
    for i, (fan_in, fan_out) in enumerate(dims, start=1):
        key, kw, kb = jax.random.split(key, 3)
        bound = 1.0 / jnp.sqrt(fan_in)
        params[f"w{i}"] = jax.random.uniform(
            kw, (fan_out, fan_in), jnp.float32, -bound, bound)   # (out, in)
        params[f"b{i}"] = jax.random.uniform(
            kb, (fan_out, 1), jnp.float32, -bound, bound)        # (out, 1)
    return params


def reference_forward(x, params):
    """Pure-JAX reference matching PyTorch semantics (y = x @ W.T + b)."""
    h = x.reshape(x.shape[0], -1).astype(jnp.float32)
    h = jnp.maximum(h @ params["w1"].T + params["b1"][:, 0], 0.0)
    h = jnp.maximum(h @ params["w2"].T + params["b2"][:, 0], 0.0)
    h = jnp.maximum(h @ params["w3"].T + params["b3"][:, 0], 0.0)
    return h @ params["w4"].T + params["b4"][:, 0]


if __name__ == "__main__":
    key = jax.random.PRNGKey(0)
    key, kx, kx2 = jax.random.split(key, 3)
    params = init_params(key)

    # Small input consistent with Flatten -> Linear(4, 8): (batch=8, 2, 2).
    B = 8
    x = jax.random.normal(kx, (B, 2, 2), jnp.float32)
    logits = jax.block_until_ready(neural_network_forward(x, params))
    ref = reference_forward(x, params)
    assert logits.shape == (B, D_OUT), logits.shape
    assert jnp.allclose(logits, ref, atol=1e-5, rtol=1e-5), "mismatch vs reference"

    # Exercise the multi-tile (grid > 1) + padding path with a non-aligned batch.
    B2 = 300
    x_big = jax.random.normal(kx2, (B2, 4), jnp.float32)
    logits_big = jax.block_until_ready(
        neural_network_forward(x_big, params, tb=128))    # grid = (3,)
    ref_big = reference_forward(x_big, params)
    assert logits_big.shape == (B2, D_OUT), logits_big.shape
    assert jnp.allclose(logits_big, ref_big, atol=1e-5, rtol=1e-5), \
        "mismatch vs reference (multi-tile)"

    print("KERNEL_OK")
</pallas_src>

<mosaic_0001>
module attributes {stable_mosaic.version = 11 : i64} {
  func.func @mlp_kernel(%arg0: i32, %arg1: memref<4x128xf32, #tpu.memory_space<vmem>>, %arg2: memref<8x4xf32, #tpu.memory_space<vmem>>, %arg3: memref<8x1xf32, #tpu.memory_space<vmem>>, %arg4: memref<8x8xf32, #tpu.memory_space<vmem>>, %arg5: memref<8x1xf32, #tpu.memory_space<vmem>>, %arg6: memref<8x8xf32, #tpu.memory_space<vmem>>, %arg7: memref<8x1xf32, #tpu.memory_space<vmem>>, %arg8: memref<3x8xf32, #tpu.memory_space<vmem>>, %arg9: memref<3x1xf32, #tpu.memory_space<vmem>>, %arg10: memref<3x128xf32, #tpu.memory_space<vmem>>) attributes {dimension_semantics = [#tpu.dimension_semantics<parallel>], iteration_bounds = array<i64: 1>, scalar_prefetch = 0 : i64, scratch_operands = 0 : i64, tpu.core_type = #tpu.core_type<tc>, window_params = [{transform_indices = @transform_0, window_bounds = array<i64: 4, 128>}, {pipeline_mode = #tpu.pipeline_mode<synchronous>, transform_indices = @transform_1, window_bounds = array<i64: 8, 4>}, {pipeline_mode = #tpu.pipeline_mode<synchronous>, transform_indices = @transform_2, window_bounds = array<i64: 8, 1>}, {pipeline_mode = #tpu.pipeline_mode<synchronous>, transform_indices = @transform_3, window_bounds = array<i64: 8, 8>}, {pipeline_mode = #tpu.pipeline_mode<synchronous>, transform_indices = @transform_4, window_bounds = array<i64: 8, 1>}, {pipeline_mode = #tpu.pipeline_mode<synchronous>, transform_indices = @transform_5, window_bounds = array<i64: 8, 8>}, {pipeline_mode = #tpu.pipeline_mode<synchronous>, transform_indices = @transform_6, window_bounds = array<i64: 8, 1>}, {pipeline_mode = #tpu.pipeline_mode<synchronous>, transform_indices = @transform_7, window_bounds = array<i64: 3, 8>}, {pipeline_mode = #tpu.pipeline_mode<synchronous>, transform_indices = @transform_8, window_bounds = array<i64: 3, 1>}, {transform_indices = @transform_9, window_bounds = array<i64: 3, 128>}]} {
    %c0 = arith.constant 0 : index
    %c0_0 = arith.constant 0 : index
    %0 = vector.load %arg1[%c0, %c0_0] : memref<4x128xf32, #tpu.memory_space<vmem>>, vector<4x128xf32>
    %c0_1 = arith.constant 0 : index
    %c0_2 = arith.constant 0 : index
    %1 = vector.load %arg2[%c0_1, %c0_2] : memref<8x4xf32, #tpu.memory_space<vmem>>, vector<8x4xf32>
    %cst = arith.constant dense<0.000000e+00> : vector<8x128xf32>
    %2 = tpu.matmul %1, %0, %cst {dimension_numbers = #tpu.dot_dimension_numbers<[1], [0], [0], [1], [0, 0, 1, 1], [], []>} : vector<8x4xf32>, vector<4x128xf32>, vector<8x128xf32> -> vector<8x128xf32>
    %c0_3 = arith.constant 0 : index
    %c0_4 = arith.constant 0 : index
    %3 = vector.load %arg3[%c0_3, %c0_4] : memref<8x1xf32, #tpu.memory_space<vmem>>, vector<8x1xf32>
    %4 = vector.broadcast %3 : vector<8x1xf32> to vector<8x128xf32>
    %5 = arith.addf %2, %4 : vector<8x128xf32>
    %cst_5 = arith.constant 0.000000e+00 : f32
    %6 = vector.broadcast %cst_5 : f32 to vector<8x128xf32>
    %7 = arith.maximumf %5, %6 : vector<8x128xf32>
    %c0_6 = arith.constant 0 : index
    %c0_7 = arith.constant 0 : index
    %8 = vector.load %arg4[%c0_6, %c0_7] : memref<8x8xf32, #tpu.memory_space<vmem>>, vector<8x8xf32>
    %cst_8 = arith.constant dense<0.000000e+00> : vector<8x128xf32>
    %9 = tpu.matmul %8, %7, %cst_8 {dimension_numbers = #tpu.dot_dimension_numbers<[1], [0], [0], [1], [0, 0, 1, 1], [], []>} : vector<8x8xf32>, vector<8x128xf32>, vector<8x128xf32> -> vector<8x128xf32>
    %c0_9 = arith.constant 0 : index
    %c0_10 = arith.constant 0 : index
    %10 = vector.load %arg5[%c0_9, %c0_10] : memref<8x1xf32, #tpu.memory_space<vmem>>, vector<8x1xf32>
    %11 = vector.broadcast %10 : vector<8x1xf32> to vector<8x128xf32>
    %12 = arith.addf %9, %11 : vector<8x128xf32>
    %cst_11 = arith.constant 0.000000e+00 : f32
    %13 = vector.broadcast %cst_11 : f32 to vector<8x128xf32>
    %14 = arith.maximumf %12, %13 : vector<8x128xf32>
    %c0_12 = arith.constant 0 : index
    %c0_13 = arith.constant 0 : index
    %15 = vector.load %arg6[%c0_12, %c0_13] : memref<8x8xf32, #tpu.memory_space<vmem>>, vector<8x8xf32>
    %cst_14 = arith.constant dense<0.000000e+00> : vector<8x128xf32>
    %16 = tpu.matmul %15, %14, %cst_14 {dimension_numbers = #tpu.dot_dimension_numbers<[1], [0], [0], [1], [0, 0, 1, 1], [], []>} : vector<8x8xf32>, vector<8x128xf32>, vector<8x128xf32> -> vector<8x128xf32>
    %c0_15 = arith.constant 0 : index
    %c0_16 = arith.constant 0 : index
    %17 = vector.load %arg7[%c0_15, %c0_16] : memref<8x1xf32, #tpu.memory_space<vmem>>, vector<8x1xf32>
    %18 = vector.broadcast %17 : vector<8x1xf32> to vector<8x128xf32>
    %19 = arith.addf %16, %18 : vector<8x128xf32>
    %cst_17 = arith.constant 0.000000e+00 : f32
    %20 = vector.broadcast %cst_17 : f32 to vector<8x128xf32>
    %21 = arith.maximumf %19, %20 : vector<8x128xf32>
    %c0_18 = arith.constant 0 : index
    %c0_19 = arith.constant 0 : index
    %22 = vector.load %arg8[%c0_18, %c0_19] : memref<3x8xf32, #tpu.memory_space<vmem>>, vector<3x8xf32>
    %cst_20 = arith.constant dense<0.000000e+00> : vector<3x128xf32>
    %23 = tpu.matmul %22, %21, %cst_20 {dimension_numbers = #tpu.dot_dimension_numbers<[1], [0], [0], [1], [0, 0, 1, 1], [], []>} : vector<3x8xf32>, vector<8x128xf32>, vector<3x128xf32> -> vector<3x128xf32>
    %c0_21 = arith.constant 0 : index
    %c0_22 = arith.constant 0 : index
    %24 = vector.load %arg9[%c0_21, %c0_22] : memref<3x1xf32, #tpu.memory_space<vmem>>, vector<3x1xf32>
    %25 = vector.broadcast %24 : vector<3x1xf32> to vector<3x128xf32>
    %26 = arith.addf %23, %25 : vector<3x128xf32>
    %c0_23 = arith.constant 0 : index
    %c0_24 = arith.constant 0 : index
    %27 = vector.load %arg10[%c0_23, %c0_24] : memref<3x128xf32, #tpu.memory_space<vmem>>, vector<3x128xf32>
    tpu.vector_store %arg10[%c0_23, %c0_24], %26 {strides = array<i32>} : memref<3x128xf32, #tpu.memory_space<vmem>>, vector<3x128xf32>,
    return
  }
  func.func @transform_0(%arg0: i32) -> (i32, i32) {
    %c0_i32 = arith.constant 0 : i32
    %c0_i32_0 = arith.constant 0 : i32
    return %c0_i32, %arg0 : i32, i32
  }
  func.func @transform_1(%arg0: i32) -> (i32, i32) {
    %c0_i32 = arith.constant 0 : i32
    %c0_i32_0 = arith.constant 0 : i32
    %c0_i32_1 = arith.constant 0 : i32
    return %c0_i32, %c0_i32_0 : i32, i32
  }
  func.func @transform_2(%arg0: i32) -> (i32, i32) {
    %c0_i32 = arith.constant 0 : i32
    %c0_i32_0 = arith.constant 0 : i32
    %c0_i32_1 = arith.constant 0 : i32
    return %c0_i32, %c0_i32_0 : i32, i32
  }
  func.func @transform_3(%arg0: i32) -> (i32, i32) {
    %c0_i32 = arith.constant 0 : i32
    %c0_i32_0 = arith.constant 0 : i32
    %c0_i32_1 = arith.constant 0 : i32
    return %c0_i32, %c0_i32_0 : i32, i32
  }
  func.func @transform_4(%arg0: i32) -> (i32, i32) {
    %c0_i32 = arith.constant 0 : i32
    %c0_i32_0 = arith.constant 0 : i32
    %c0_i32_1 = arith.constant 0 : i32
    return %c0_i32, %c0_i32_0 : i32, i32
  }
  func.func @transform_5(%arg0: i32) -> (i32, i32) {
    %c0_i32 = arith.constant 0 : i32
    %c0_i32_0 = arith.constant 0 : i32
    %c0_i32_1 = arith.constant 0 : i32
    return %c0_i32, %c0_i32_0 : i32, i32
  }
  func.func @transform_6(%arg0: i32) -> (i32, i32) {
    %c0_i32 = arith.constant 0 : i32
    %c0_i32_0 = arith.constant 0 : i32
    %c0_i32_1 = arith.constant 0 : i32
    return %c0_i32, %c0_i32_0 : i32, i32
  }
  func.func @transform_7(%arg0: i32) -> (i32, i32) {
    %c0_i32 = arith.constant 0 : i32
    %c0_i32_0 = arith.constant 0 : i32
    %c0_i32_1 = arith.constant 0 : i32
    return %c0_i32, %c0_i32_0 : i32, i32
  }
  func.func @transform_8(%arg0: i32) -> (i32, i32) {
    %c0_i32 = arith.constant 0 : i32
    %c0_i32_0 = arith.constant 0 : i32
    %c0_i32_1 = arith.constant 0 : i32
    return %c0_i32, %c0_i32_0 : i32, i32
  }
  func.func @transform_9(%arg0: i32) -> (i32, i32) {
    %c0_i32 = arith.constant 0 : i32
    %c0_i32_0 = arith.constant 0 : i32
    return %c0_i32, %arg0 : i32, i32
  }
}

</mosaic_0001>

<llo_original>
// kernel: neural_network_forward.1
$region0: #{neural_network_forward.1}
  #allocation0 [shape = 'u32[]', space=smem, size = 0x4, offset = 0x4, fixed_abs, tag = 'smem constant byte address 0x4 - core index']
  #allocation1 [shape = 'u32[144,128]{1,0:T(1,128)}', space=vmem, size = 0x12000, scoped, tag = 'internal scratch']
  %s0 = inlined_call_operand.vmem [shape: f32[4,128], index: 0, kind: input, shape index: {}]
  %s1 = inlined_call_operand.vmem [shape: f32[8,4], index: 1, kind: input, shape index: {}]
  %s2 = inlined_call_operand.vmem [shape: f32[8,1], index: 2, kind: input, shape index: {}]
  %s3 = inlined_call_operand.vmem [shape: f32[8,8], index: 3, kind: input, shape index: {}]
  %s4 = inlined_call_operand.vmem [shape: f32[8,1], index: 4, kind: input, shape index: {}]
  %s5 = inlined_call_operand.vmem [shape: f32[8,8], index: 5, kind: input, shape index: {}]
  %s6 = inlined_call_operand.vmem [shape: f32[8,1], index: 6, kind: input, shape index: {}]
  %s7 = inlined_call_operand.vmem [shape: f32[3,8], index: 7, kind: input, shape index: {}]
  %s8 = inlined_call_operand.vmem [shape: f32[3,1], index: 8, kind: input, shape index: {}]
  %s9 = inlined_call_operand.vmem [shape: f32[3,128], index: 9, kind: output, shape index: {}]
  %s10 = sld [smem:[#allocation0]]
  $region46: #{neural_network_forward.1} parent=0
    _
  %s12 = ssub.s32 1, %s10
  %s13 = scalar_select 0, %s12, %s10
  // Predicated region
  $region2: #{neural_network_forward.1} parent=0 // pred_check
    _
  $region3: #{neural_network_forward.1} parent=0 // pred_check_branch
    %15 = sbr.rel (0) target = $region5
  $region4: #{neural_network_forward.1} parent=0 // pred_region
    _
  $region5: #{neural_network_forward.1} parent=0 // pred_fallthru
    _
  // Predicated region
  $region6: #{neural_network_forward.1} parent=0 // pred_check
    _
  $region7: #{neural_network_forward.1} parent=0 // pred_check_branch
    %17 = sbr.rel (0) target = $region9
  $region8: #{neural_network_forward.1} parent=0 // pred_region
    _
  $region9: #{neural_network_forward.1} parent=0 // pred_fallthru
    _
  // Predicated region
  $region10: #{neural_network_forward.1} parent=0 // pred_check
    _
  $region11: #{neural_network_forward.1} parent=0 // pred_check_branch
    %19 = sbr.rel (0) target = $region13
  $region12: #{neural_network_forward.1} parent=0 // pred_region
    _
  $region13: #{neural_network_forward.1} parent=0 // pred_fallthru
    _
  // Predicated region
  $region14: #{neural_network_forward.1} parent=0 // pred_check
    _
  $region15: #{neural_network_forward.1} parent=0 // pred_check_branch
    %21 = sbr.rel (0) target = $region17
  $region16: #{neural_network_forward.1} parent=0 // pred_region
    _
  $region17: #{neural_network_forward.1} parent=0 // pred_fallthru
    _
  // Predicated region
  $region18: #{neural_network_forward.1} parent=0 // pred_check
    _
  $region19: #{neural_network_forward.1} parent=0 // pred_check_branch
    %23 = sbr.rel (0) target = $region21
  $region20: #{neural_network_forward.1} parent=0 // pred_region
    _
  $region21: #{neural_network_forward.1} parent=0 // pred_fallthru
    _
  // Predicated region
  $region22: #{neural_network_forward.1} parent=0 // pred_check
    _
  $region23: #{neural_network_forward.1} parent=0 // pred_check_branch
    %25 = sbr.rel (0) target = $region25
  $region24: #{neural_network_forward.1} parent=0 // pred_region
    _
  $region25: #{neural_network_forward.1} parent=0 // pred_fallthru
    _
  // Predicated region
  $region26: #{neural_network_forward.1} parent=0 // pred_check
    _
  $region27: #{neural_network_forward.1} parent=0 // pred_check_branch
    %27 = sbr.rel (0) target = $region29
  $region28: #{neural_network_forward.1} parent=0 // pred_region
    _
  $region29: #{neural_network_forward.1} parent=0 // pred_fallthru
    _
  // Predicated region
  $region30: #{neural_network_forward.1} parent=0 // pred_check
    _
  $region31: #{neural_network_forward.1} parent=0 // pred_check_branch
    %29 = sbr.rel (0) target = $region33
  $region32: #{neural_network_forward.1} parent=0 // pred_region
    _
  $region33: #{neural_network_forward.1} parent=0 // pred_fallthru
    _
  // Predicated region
  $region34: #{neural_network_forward.1} parent=0 // pred_check
    _
  $region35: #{neural_network_forward.1} parent=0 // pred_check_branch
    %31 = sbr.rel (0) target = $region37
  $region36: #{neural_network_forward.1} parent=0 // pred_region
    _
  $region37: #{neural_network_forward.1} parent=0 // pred_fallthru
    _
  %v32 = vld [vmem:[%s0] sm:$0xf]
  %v33 = vld [vmem:[%s1] sm:$0xff]
  %v34 = vld [vmem:[%s2] sm:$0xff]
  %36 = vset.pattern.permute.xlu0 0
  %37 = vperm.xlu0 %36, %v34
  %v38 = vpop.permute.xlu0 %37
  %vm40 = vcmask 31744
  %v42 = vsel %vm40, %v33, 0
  %vm44 = vcmask 1043456
  %v46 = vsel %vm44, %v32, 0
  %48 = vmatprep.subr.mxu0 0.0
  %49 = vmatpush1.msra.mxu0 0.0
  %50 = vmatprep.subr.mxu0 0.0
  %51 = vmatpush1.msra.mxu0 0.0
  %52 = vmatprep.subr.mxu0 0.0
  %53 = vmatpush1.msra.mxu0 0.0
  %54 = vmatprep.subr.mxu0 0.0
  %55 = vmatpush1.msra.mxu0 0.0
  %56 = vmatprep.subr.mxu0 0.0
  %57 = vmatpush1.msra.mxu0 0.0
  %58 = vmatprep.subr.mxu0 0.0
  %59 = vmatpush1.msra.mxu0 0.0
  %60 = vmatprep.subr.mxu0 0.0
  %61 = vmatpush1.msra.mxu0 0.0
  %62 = vmatprep.subr.mxu0 0.0
  %63 = vmatpush1.msra.mxu0 0.0
  %64 = vmatprep.subr.mxu0 0.0
  %65 = vmatpush1.msra.mxu0 0.0
  %66 = vmatprep.subr.mxu0 0.0
  %67 = vmatpush1.msra.mxu0 0.0
  %68 = vmatprep.subr.mxu0 0.0
  %69 = vmatpush1.msra.mxu0 0.0
  %70 = vmatprep.subr.mxu0 0.0
  %71 = vmatpush1.msra.mxu0 0.0
  %72 = vmatprep.subr.mxu0 0.0
  %73 = vmatpush1.msra.mxu0 0.0
  %74 = vmatprep.subr.mxu0 0.0
  %75 = vmatpush1.msra.mxu0 0.0
  %76 = vmatprep.subr.mxu0 0.0
  %77 = vmatpush1.msra.mxu0 0.0
  %78 = vmatprep.subr.mxu0 0.0
  %79 = vmatpush1.msra.mxu0 %v46
  %80 = vmatprep.subr.mxu0 0.0
  %81 = vmatpush2.msra.mxu0 0.0
  %82 = vmatprep.subr.mxu0 0.0
  %83 = vmatpush2.msra.mxu0 0.0
  %84 = vmatprep.subr.mxu0 0.0
  %85 = vmatpush2.msra.mxu0 0.0
  %86 = vmatprep.subr.mxu0 0.0
  %87 = vmatpush2.msra.mxu0 0.0
  %88 = vmatprep.subr.mxu0 0.0
  %89 = vmatpush2.msra.mxu0 0.0
  %90 = vmatprep.subr.mxu0 0.0
  %91 = vmatpush2.msra.mxu0 0.0
  %92 = vmatprep.subr.mxu0 0.0
  %93 = vmatpush2.msra.mxu0 0.0
  %94 = vmatprep.subr.mxu0 0.0
  %95 = vmatpush2.msra.mxu0 0.0
  %96 = vmatprep.subr.mxu0 0.0
  %97 = vmatpush2.msra.mxu0 0.0
  %98 = vmatprep.subr.mxu0 0.0
  %99 = vmatpush2.msra.mxu0 0.0
  %100 = vmatprep.subr.mxu0 0.0
  %101 = vmatpush2.msra.mxu0 0.0
  %102 = vmatprep.subr.mxu0 0.0
  %103 = vmatpush2.msra.mxu0 0.0
  %104 = vmatprep.subr.mxu0 0.0
  %105 = vmatpush2.msra.mxu0 0.0
  %106 = vmatprep.subr.mxu0 0.0
  %107 = vmatpush2.msra.mxu0 0.0
  %108 = vmatprep.subr.mxu0 0.0
  %109 = vmatpush2.msra.mxu0 0.0
  %110 = vmatprep.subr.mxu0 0.0
  %111 = vmatpush2.msra.mxu0 0.0
  %112 = vmatprep.mubr.f32.mxu0 0.0
  %113 = vmatmul.mubr.f32.gmra.mxu0 %v42
  %v114 = vpop.f32.mrf.mxu0
  %v115 = vadd.f32 %v38, %v114
  %v116 = vpop.f32.mrf.mxu0
  %117 = vdwg.mxu0
  %v118 = vmax.f32 %v115, 0.0
  %v119 = vld [vmem:[%s3] sm:$0xff]
  %v120 = vld [vmem:[%s4] sm:$0xff]
  %122 = vset.pattern.permute.xlu0 0
  %123 = vperm.xlu0 %122, %v120
  %v124 = vpop.permute.xlu0 %123
  %vm126 = vcmask 64512
  %v128 = vsel %vm126, %v119, 0
  %130 = vmatprep.subr.mxu0 0.0
  %131 = vmatpush1.msra.mxu0 0.0
  %132 = vmatprep.subr.mxu0 0.0
  %133 = vmatpush1.msra.mxu0 0.0
  %134 = vmatprep.subr.mxu0 0.0
  %135 = vmatpush1.msra.mxu0 0.0
  %136 = vmatprep.subr.mxu0 0.0
  %137 = vmatpush1.msra.mxu0 0.0
  %138 = vmatprep.subr.mxu0 0.0
  %139 = vmatpush1.msra.mxu0 0.0
  %140 = vmatprep.subr.mxu0 0.0
  %141 = vmatpush1.msra.mxu0 0.0
  %142 = vmatprep.subr.mxu0 0.0
  %143 = vmatpush1.msra.mxu0 0.0
  %144 = vmatprep.subr.mxu0 0.0
  %145 = vmatpush1.msra.mxu0 0.0
  %146 = vmatprep.subr.mxu0 0.0
  %147 = vmatpush1.msra.mxu0 0.0
  %148 = vmatprep.subr.mxu0 0.0
  %149 = vmatpush1.msra.mxu0 0.0
  %150 = vmatprep.subr.mxu0 0.0
  %151 = vmatpush1.msra.mxu0 0.0
  %152 = vmatprep.subr.mxu0 0.0
  %153 = vmatpush1.msra.mxu0 0.0
  %154 = vmatprep.subr.mxu0 0.0
  %155 = vmatpush1.msra.mxu0 0.0
  %156 = vmatprep.subr.mxu0 0.0
  %157 = vmatpush1.msra.mxu0 0.0
  %158 = vmatprep.subr.mxu0 0.0
  %159 = vmatpush1.msra.mxu0 0.0
  %160 = vmatprep.subr.mxu0 0.0
  %161 = vmatpush1.msra.mxu0 %v118
  %162 = vmatprep.subr.mxu0 0.0
  %163 = vmatpush2.msra.mxu0 0.0
  %164 = vmatprep.subr.mxu0 0.0
  %165 = vmatpush2.msra.mxu0 0.0
  %166 = vmatprep.subr.mxu0 0.0
  %167 = vmatpush2.msra.mxu0 0.0
  %168 = vmatprep.subr.mxu0 0.0
  %169 = vmatpush2.msra.mxu0 0.0
  %170 = vmatprep.subr.mxu0 0.0
  %171 = vmatpush2.msra.mxu0 0.0
  %172 = vmatprep.subr.mxu0 0.0
  %173 = vmatpush2.msra.mxu0 0.0
  %174 = vmatprep.subr.mxu0 0.0
  %175 = vmatpush2.msra.mxu0 0.0
  %176 = vmatprep.subr.mxu0 0.0
  %177 = vmatpush2.msra.mxu0 0.0
  %178 = vmatprep.subr.mxu0 0.0
  %179 = vmatpush2.msra.mxu0 0.0
  %180 = vmatprep.subr.mxu0 0.0
  %181 = vmatpush2.msra.mxu0 0.0
  %182 = vmatprep.subr.mxu0 0.0
  %183 = vmatpush2.msra.mxu0 0.0
  %184 = vmatprep.subr.mxu0 0.0
  %185 = vmatpush2.msra.mxu0 0.0
  %186 = vmatprep.subr.mxu0 0.0
  %187 = vmatpush2.msra.mxu0 0.0
  %188 = vmatprep.subr.mxu0 0.0
  %189 = vmatpush2.msra.mxu0 0.0
  %190 = vmatprep.subr.mxu0 0.0
  %191 = vmatpush2.msra.mxu0 0.0
  %192 = vmatprep.subr.mxu0 0.0
  %193 = vmatpush2.msra.mxu0 0.0
  %194 = vmatprep.mubr.f32.mxu0 0.0
  %195 = vmatmul.mubr.f32.gmra.mxu0 %v128
  %v196 = vpop.f32.mrf.mxu0
  %v197 = vadd.f32 %v124, %v196
  %v198 = vpop.f32.mrf.mxu0
  %199 = vdwg.mxu0
  %v200 = vmax.f32 %v197, 0.0
  %v201 = vld [vmem:[%s5] sm:$0xff]
  %v202 = vld [vmem:[%s6] sm:$0xff]
  %204 = vset.pattern.permute.xlu0 0
  %205 = vperm.xlu0 %204, %v202
  %v206 = vpop.permute.xlu0 %205
  %v209 = vsel %vm126, %v201, 0
  %211 = vmatprep.subr.mxu0 0.0
  %212 = vmatpush1.msra.mxu0 0.0
  %213 = vmatprep.subr.mxu0 0.0
  %214 = vmatpush1.msra.mxu0 0.0
  %215 = vmatprep.subr.mxu0 0.0
  %216 = vmatpush1.msra.mxu0 0.0
  %217 = vmatprep.subr.mxu0 0.0
  %218 = vmatpush1.msra.mxu0 0.0
  %219 = vmatprep.subr.mxu0 0.0
  %220 = vmatpush1.msra.mxu0 0.0
  %221 = vmatprep.subr.mxu0 0.0
  %222 = vmatpush1.msra.mxu0 0.0
  %223 = vmatprep.subr.mxu0 0.0
  %224 = vmatpush1.msra.mxu0 0.0
  %225 = vmatprep.subr.mxu0 0.0
  %226 = vmatpush1.msra.mxu0 0.0
  %227 = vmatprep.subr.mxu0 0.0
  %228 = vmatpush1.msra.mxu0 0.0
  %229 = vmatprep.subr.mxu0 0.0
  %230 = vmatpush1.msra.mxu0 0.0
  %231 = vmatprep.subr.mxu0 0.0
  %232 = vmatpush1.msra.mxu0 0.0
  %233 = vmatprep.subr.mxu0 0.0
  %234 = vmatpush1.msra.mxu0 0.0
  %235 = vmatprep.subr.mxu0 0.0
  %236 = vmatpush1.msra.mxu0 0.0
  %237 = vmatprep.subr.mxu0 0.0
  %238 = vmatpush1.msra.mxu0 0.0
  %239 = vmatprep.subr.mxu0 0.0
  %240 = vmatpush1.msra.mxu0 0.0
  %241 = vmatprep.subr.mxu0 0.0
  %242 = vmatpush1.msra.mxu0 %v200
  %243 = vmatprep.subr.mxu0 0.0
  %244 = vmatpush2.msra.mxu0 0.0
  %245 = vmatprep.subr.mxu0 0.0
  %246 = vmatpush2.msra.mxu0 0.0
  %247 = vmatprep.subr.mxu0 0.0
  %248 = vmatpush2.msra.mxu0 0.0
  %249 = vmatprep.subr.mxu0 0.0
  %250 = vmatpush2.msra.mxu0 0.0
  %251 = vmatprep.subr.mxu0 0.0
  %252 = vmatpush2.msra.mxu0 0.0
  %253 = vmatprep.subr.mxu0 0.0
  %254 = vmatpush2.msra.mxu0 0.0
  %255 = vmatprep.subr.mxu0 0.0
  %256 = vmatpush2.msra.mxu0 0.0
  %257 = vmatprep.subr.mxu0 0.0
  %258 = vmatpush2.msra.mxu0 0.0
  %259 = vmatprep.subr.mxu0 0.0
  %260 = vmatpush2.msra.mxu0 0.0
  %261 = vmatprep.subr.mxu0 0.0
  %262 = vmatpush2.msra.mxu0 0.0
  %263 = vmatprep.subr.mxu0 0.0
  %264 = vmatpush2.msra.mxu0 0.0
  %265 = vmatprep.subr.mxu0 0.0
  %266 = vmatpush2.msra.mxu0 0.0
  %267 = vmatprep.subr.mxu0 0.0
  %268 = vmatpush2.msra.mxu0 0.0
  %269 = vmatprep.subr.mxu0 0.0
  %270 = vmatpush2.msra.mxu0 0.0
  %271 = vmatprep.subr.mxu0 0.0
  %272 = vmatpush2.msra.mxu0 0.0
  %273 = vmatprep.subr.mxu0 0.0
  %274 = vmatpush2.msra.mxu0 0.0
  %275 = vmatprep.mubr.f32.mxu0 0.0
  %276 = vmatmul.mubr.f32.gmra.mxu0 %v209
  %v277 = vpop.f32.mrf.mxu0
  %v278 = vadd.f32 %v206, %v277
  %v279 = vpop.f32.mrf.mxu0
  %280 = vdwg.mxu0
  %v281 = vmax.f32 %v278, 0.0
  %v282 = vld [vmem:[%s7] sm:$0x7]
  %v283 = vld [vmem:[%s8] sm:$0x7]
  %285 = vset.pattern.permute.xlu0 0
  %286 = vperm.xlu0 %285, %v283
  %v287 = vpop.permute.xlu0 %286
  %v290 = vsel %vm126, %v282, 0
  %292 = vmatprep.subr.mxu0 0.0
  %293 = vmatpush1.msra.mxu0 0.0
  %294 = vmatprep.subr.mxu0 0.0
  %295 = vmatpush1.msra.mxu0 0.0
  %296 = vmatprep.subr.mxu0 0.0
  %297 = vmatpush1.msra.mxu0 0.0
  %298 = vmatprep.subr.mxu0 0.0
  %299 = vmatpush1.msra.mxu0 0.0
  %300 = vmatprep.subr.mxu0 0.0
  %301 = vmatpush1.msra.mxu0 0.0
  %302 = vmatprep.subr.mxu0 0.0
  %303 = vmatpush1.msra.mxu0 0.0
  %304 = vmatprep.subr.mxu0 0.0
  %305 = vmatpush1.msra.mxu0 0.0
  %306 = vmatprep.subr.mxu0 0.0
  %307 = vmatpush1.msra.mxu0 0.0
  %308 = vmatprep.subr.mxu0 0.0
  %309 = vmatpush1.msra.mxu0 0.0
  %310 = vmatprep.subr.mxu0 0.0
  %311 = vmatpush1.msra.mxu0 0.0
  %312 = vmatprep.subr.mxu0 0.0
  %313 = vmatpush1.msra.mxu0 0.0
  %314 = vmatprep.subr.mxu0 0.0
  %315 = vmatpush1.msra.mxu0 0.0
  %316 = vmatprep.subr.mxu0 0.0
  %317 = vmatpush1.msra.mxu0 0.0
  %318 = vmatprep.subr.mxu0 0.0
  %319 = vmatpush1.msra.mxu0 0.0
  %320 = vmatprep.subr.mxu0 0.0
  %321 = vmatpush1.msra.mxu0 0.0
  %322 = vmatprep.subr.mxu0 0.0
  %323 = vmatpush1.msra.mxu0 %v281
  %324 = vmatprep.subr.mxu0 0.0
  %325 = vmatpush2.msra.mxu0 0.0
  %326 = vmatprep.subr.mxu0 0.0
  %327 = vmatpush2.msra.mxu0 0.0
  %328 = vmatprep.subr.mxu0 0.0
  %329 = vmatpush2.msra.mxu0 0.0
  %330 = vmatprep.subr.mxu0 0.0
  %331 = vmatpush2.msra.mxu0 0.0
  %332 = vmatprep.subr.mxu0 0.0
  %333 = vmatpush2.msra.mxu0 0.0
  %334 = vmatprep.subr.mxu0 0.0
  %335 = vmatpush2.msra.mxu0 0.0
  %336 = vmatprep.subr.mxu0 0.0
  %337 = vmatpush2.msra.mxu0 0.0
  %338 = vmatprep.subr.mxu0 0.0
  %339 = vmatpush2.msra.mxu0 0.0
  %340 = vmatprep.subr.mxu0 0.0
  %341 = vmatpush2.msra.mxu0 0.0
  %342 = vmatprep.subr.mxu0 0.0
  %343 = vmatpush2.msra.mxu0 0.0
  %344 = vmatprep.subr.mxu0 0.0
  %345 = vmatpush2.msra.mxu0 0.0
  %346 = vmatprep.subr.mxu0 0.0
  %347 = vmatpush2.msra.mxu0 0.0
  %348 = vmatprep.subr.mxu0 0.0
  %349 = vmatpush2.msra.mxu0 0.0
  %350 = vmatprep.subr.mxu0 0.0
  %351 = vmatpush2.msra.mxu0 0.0
  %352 = vmatprep.subr.mxu0 0.0
  %353 = vmatpush2.msra.mxu0 0.0
  %354 = vmatprep.subr.mxu0 0.0
  %355 = vmatpush2.msra.mxu0 0.0
  %356 = vmatprep.mubr.f32.mxu0 0.0
  %357 = vmatmul.mubr.f32.gmra.mxu0 %v290
  %v358 = vpop.f32.mrf.mxu0
  %v359 = vadd.f32 %v287, %v358
  %v360 = vpop.f32.mrf.mxu0
  %361 = vdwg.mxu0
  %362 = vst [vmem:[%s9] sm:$0x7] %v359
  // Predicated region
  $region38: #{neural_network_forward.1} parent=0 // pred_check
    _
  $region39: #{neural_network_forward.1} parent=0 // pred_check_branch
    %364 = sbr.rel (0) target = $region41
  $region40: #{neural_network_forward.1} parent=0 // pred_region
    _
  $region41: #{neural_network_forward.1} parent=0 // pred_fallthru
    _
  // Predicated region
  $region42: #{neural_network_forward.1} parent=0 // pred_check
    _
  $region43: #{neural_network_forward.1} parent=0 // pred_check_branch
    %366 = sbr.rel (0) target = $region45
  $region44: #{neural_network_forward.1} parent=0 // pred_region
    _
  $region45: #{neural_network_forward.1} parent=0 // pred_fallthru
    _

</llo_original>
